<compile_context>
chip_gen: v5e
topology: v5e:2x2
jax: 0.10.0
libtpu: 0.0.40
codegen_flags: <defaults>
</compile_context>

<pallas_src>
import functools

import numpy as np
import jax
import jax.numpy as jnp
from jax import lax
from jax.experimental import pallas as pl
from jax.experimental.pallas import tpu as pltpu


@functools.lru_cache(maxsize=None)
def _roll_matches_jnp():
    """Probe pltpu.roll's rotation convention once (tiny kernel, cached)."""
    def probe(x_ref, o_ref):
        o_ref[...] = pltpu.roll(x_ref[...], 1, axis=1)

    x = jnp.tile(jnp.arange(256, dtype=jnp.float32)[None, :], (8, 1))
    y = pl.pallas_call(
        probe, out_shape=jax.ShapeDtypeStruct((8, 256), jnp.float32))(x)
    # jnp.roll convention: out[0] == x[-1] == 255
    return bool(float(jax.device_get(y)[0, 0]) == 255.0)


def _make_kernel(W, HW, roll_like_jnp):
    """Whole-problem kernel; activations are (rows, HW), HW on lanes."""

    def lane_shift(x, s):
        # y[:, i] = x[:, (i + s) mod HW]  (wrapped lanes are zeroed by the
        # masks pre-folded into the weight slabs)
        if s == 0:
            return x
        amt = ((-s) % HW) if roll_like_jnp else (s % HW)
        return pltpu.roll(x, amt, axis=1)

    def kernel(x_ref, s2_ref, b0_ref, w1l_ref, w1h_ref, b1_ref,
               s3_ref, b2_ref, wc_ref, bc_ref, o_ref):
        x = x_ref[...]                                       # (NC, HW)

        # -- self.conv: depthwise 2x2, 'same' (taps (0,0),(0,1),(1,0),(1,1)) --
        # Separable: one horizontal roll shared by both vertical taps; all
        # boundary masks are already folded into the s2 slabs.
        xE = lane_shift(x, 1)                                # x[:, i+1]
        r0 = s2_ref[0] * x + s2_ref[1] * xE + b0_ref[...]    # dh = 0 (+bias)
        r1 = s2_ref[2] * x + s2_ref[3] * xE                  # dh = 1
        low = r0 + lane_shift(r1, W)

        # -- lhandle/hhandle 1x1 convs + ReLU: two tiny MXU matmuls ----------
        # rows 0..NC-1 = low branch, rows NC..2NC-1 = high branch (= x - low)
        lh = jnp.maximum(
            jnp.dot(w1l_ref[...], low, preferred_element_type=jnp.float32)
            + jnp.dot(w1h_ref[...], x - low, preferred_element_type=jnp.float32)
            + b1_ref[...], 0.0)                              # (2NC, HW)

        # -- lhandle/hhandle depthwise 3x3 (pad 1), fused along rows ----------
        yW = lane_shift(lh, -1)                              # lh[:, i-1]
        yE = lane_shift(lh, 1)                               # lh[:, i+1]
        t_m1 = s3_ref[0] * yW + s3_ref[1] * lh + s3_ref[2] * yE             # dh=-1
        t_00 = s3_ref[3] * yW + s3_ref[4] * lh + s3_ref[5] * yE + b2_ref[...]
        t_p1 = s3_ref[6] * yW + s3_ref[7] * lh + s3_ref[8] * yE             # dh=+1
        y = (t_00 + lane_shift(t_m1, -W)) + lane_shift(t_p1, W)

        # -- comprehensive: sigmoid -> 1x1 over 2C channels -> ReLU -----------
        sig = 0.5 * jnp.tanh(0.5 * y) + 0.5                  # exact sigmoid (EUP tanh)
        out = (jnp.dot(wc_ref[...], sig, preferred_element_type=jnp.float32)
               + bc_ref[...])
        o_ref[...] = jnp.maximum(out, 0.0)

    return kernel


@functools.partial(jax.jit, static_argnames=("roll_like_jnp",))
def _forward(x_nchw, params, *, roll_like_jnp):
    N, C, H, W = x_nchw.shape
    HW, NC = H * W, N * C
    (w0, b0, wl1, bl1, wl2, bl2, wh1, bh1, wh2, bh2, wc, bc) = params
    f32 = jnp.float32

    # ---- boundary masks (trace-time numpy constants) -------------------------
    # Pre-vertical-shift mask: mask(dh,dw)[j] = (0<=w(j)+dw<W) * (0<=h(j)-dh<H)
    # so the vertical roll needs no post-shift masking.
    j = np.arange(HW)
    hj, wj = j // W, j % W

    def mask(dh, dw):
        return (((wj + dw) >= 0) & ((wj + dw) < W)
                & ((hj - dh) >= 0) & ((hj - dh) < H)).astype(np.float32)

    # ---- self.conv depthwise 2x2: weight x mask slabs (4, NC, HW) ------------
    w0r = jnp.tile(w0.reshape(C, 2, 2).astype(f32), (N, 1, 1))           # (NC,2,2)
    s2 = jnp.stack([w0r[:, dh, dw][:, None] * jnp.asarray(mask(dh, dw))[None, :]
                    for dh in (0, 1) for dw in (0, 1)])                  # (4,NC,HW)
    b0f = jnp.broadcast_to(jnp.tile(b0.astype(f32), N)[:, None], (NC, HW))

    # ---- lhandle/hhandle 1x1 convs: batch-block-diagonal weights -------------
    eyeN = jnp.eye(N, dtype=f32)
    zblk = jnp.zeros((NC, NC), f32)
    w1l = jnp.concatenate([jnp.kron(eyeN, wl1[:, :, 0, 0].astype(f32)), zblk], 0)
    w1h = jnp.concatenate([zblk, jnp.kron(eyeN, wh1[:, :, 0, 0].astype(f32))], 0)
    b1f = jnp.broadcast_to(
        jnp.concatenate([jnp.tile(bl1.astype(f32), N),
                         jnp.tile(bh1.astype(f32), N)])[:, None], (2 * NC, HW))

    # ---- depthwise 3x3 (both branches): slabs (9, 2NC, HW) -------------------
    w2r = jnp.concatenate(
        [jnp.tile(wl2.reshape(C, 3, 3).astype(f32), (N, 1, 1)),
         jnp.tile(wh2.reshape(C, 3, 3).astype(f32), (N, 1, 1))], 0)      # (2NC,3,3)
    s3 = jnp.stack([w2r[:, dh + 1, dw + 1][:, None]
                    * jnp.asarray(mask(dh, dw))[None, :]
                    for dh in (-1, 0, 1) for dw in (-1, 0, 1)])          # (9,2NC,HW)
    b2f = jnp.broadcast_to(
        jnp.concatenate([jnp.tile(bl2.astype(f32), N),
                         jnp.tile(bh2.astype(f32), N)])[:, None], (2 * NC, HW))

    # ---- comprehensive 1x1 over concatenated [low, high] rows ----------------
    wcf = jnp.concatenate([jnp.kron(eyeN, wc[:, :C, 0, 0].astype(f32)),
                           jnp.kron(eyeN, wc[:, C:, 0, 0].astype(f32))], 1)  # (NC,2NC)
    bcf = jnp.broadcast_to(jnp.tile(bc.astype(f32), N)[:, None], (NC, HW))

    # ---- lane-dense activation layout: (N*C, H*W), a free reshape of NCHW ----
    x2 = x_nchw.reshape(NC, HW).astype(f32)

    out2 = pl.pallas_call(
        _make_kernel(W, HW, roll_like_jnp),
        out_shape=jax.ShapeDtypeStruct((NC, HW), f32),
    )(x2, s2, b0f, w1l, w1h, b1f, s3, b2f, wcf, bcf)

    return out2.reshape(N, C, H, W)


def low_threshold_dc_forward(x_nchw, params):
    return _forward(x_nchw, params, roll_like_jnp=_roll_matches_jnp())


def reference_forward(x, params):
    """Pure-JAX (XLA conv) reference mirroring the PyTorch module."""
    N, C, H, W = x.shape
    (w0, b0, wl1, bl1, wl2, bl2, wh1, bh1, wh2, bh2, wc, bc) = params
    dn = ('NCHW', 'OIHW', 'NCHW')

    def conv(inp, w, b, pad, groups):
        y = lax.conv_general_dilated(inp, w, (1, 1), pad,
                                     dimension_numbers=dn,
                                     feature_group_count=groups)
        return y + b[None, :, None, None]

    # torch padding='same' for an even kernel (k=2): pad 0 before, 1 after
    low = conv(x, w0, b0, ((0, 1), (0, 1)), C)
    high = x - low
    l = conv(jax.nn.relu(conv(low, wl1, bl1, ((0, 0), (0, 0)), 1)),
             wl2, bl2, ((1, 1), (1, 1)), C)
    h = conv(jax.nn.relu(conv(high, wh1, bh1, ((0, 0), (0, 0)), 1)),
             wh2, bh2, ((1, 1), (1, 1)), C)
    s = jax.nn.sigmoid(jnp.concatenate([l, h], axis=1))
    return jax.nn.relu(conv(s, wc, bc, ((0, 0), (0, 0)), 1))


if __name__ == "__main__":
    N, C, H, W = 2, 4, 16, 16
    key = jax.random.PRNGKey(0)
    keys = jax.random.split(key, 13)
    gen = lambda k, s: 0.2 * jax.random.normal(k, s, jnp.float32)

    x = jax.random.normal(keys[0], (N, C, H, W), jnp.float32)
    params = (
        gen(keys[1], (C, 1, 2, 2)),  gen(keys[2], (C,)),       # self.conv (dw 2x2)
        gen(keys[3], (C, C, 1, 1)),  gen(keys[4], (C,)),       # lhandle pw 1x1
        gen(keys[5], (C, 1, 3, 3)),  gen(keys[6], (C,)),       # lhandle dw 3x3
        gen(keys[7], (C, C, 1, 1)),  gen(keys[8], (C,)),       # hhandle pw 1x1
        gen(keys[9], (C, 1, 3, 3)),  gen(keys[10], (C,)),      # hhandle dw 3x3
        gen(keys[11], (C, 2 * C, 1, 1)), gen(keys[12], (C,)),  # comprehensive 1x1
    )

    out = jax.block_until_ready(low_threshold_dc_forward(x, params))
    ref = jax.block_until_ready(reference_forward(x, params))

    assert out.shape == (N, C, H, W)
    max_err = float(jnp.max(jnp.abs(out - ref)))
    assert max_err < 1e-4, f"mismatch vs reference: {max_err}"
    print("KERNEL_OK")
</pallas_src>

<mosaic_0001>
module attributes {stable_mosaic.version = 11 : i64} {
  func.func @probe(%arg0: memref<8x256xf32, #tpu.memory_space<vmem>>, %arg1: memref<8x256xf32, #tpu.memory_space<vmem>>) attributes {dimension_semantics = [], scalar_prefetch = 0 : i64, scratch_operands = 0 : i64, tpu.core_type = #tpu.core_type<tc>} {
    %c0 = arith.constant 0 : index
    %c0_0 = arith.constant 0 : index
    %0 = vector.load %arg0[%c0, %c0_0] : memref<8x256xf32, #tpu.memory_space<vmem>>, vector<8x256xf32>
    %c1_i32 = arith.constant 1 : i32
    %1 = tpu.dynamic_rotate %0 by %c1_i32 dim 1 : vector<8x256xf32>, i32 -> vector<8x256xf32>
    %c0_1 = arith.constant 0 : index
    %c0_2 = arith.constant 0 : index
    %2 = vector.load %arg1[%c0_1, %c0_2] : memref<8x256xf32, #tpu.memory_space<vmem>>, vector<8x256xf32>
    tpu.vector_store %arg1[%c0_1, %c0_2], %1 {strides = array<i32>} : memref<8x256xf32, #tpu.memory_space<vmem>>, vector<8x256xf32>,
    return
  }
}

</mosaic_0001>

<llo_original>
// kernel: tpu_custom_call.1
$region0: #{tpu_custom_call.1}
  #allocation0 [shape = 'u32[]', space=smem, size = 0x4, offset = 0x4, fixed_abs, tag = 'smem constant byte address 0x4 - core index']
  #allocation1 [shape = 'u32[72,128]{1,0:T(1,128)}', space=vmem, size = 0x9000, scoped, tag = 'internal scratch']
  %s0 = inlined_call_operand.hbm [shape: f32[8,256], index: 0, kind: input, shape index: {}]
  %s1 = inlined_call_operand.hbm [shape: f32[8,256], index: 1, kind: output, shape index: {}]
  %s2 = sld [smem:[#allocation0]]
  $region18: #{tpu_custom_call.1} parent=0
    _
  %s4 = ssub.s32 1, %s2
  %s5 = scalar_select 0, %s4, %s2
  $region1: #{tpu_custom_call.1} parent=0
    #allocation2 [shape = 'u8[8192]{0}', space=vmem, size = 0x2000, scoped, tag = 'input window, operand 0, single buffered']
    #allocation3 [shape = 's32[1]{0}', space=sflag, size = 0x4, scoped, tag = 'scoped memory for tpu_custom_call.1']
    #allocation4 [shape = 's32[1]{0}', space=sflag, size = 0x4, scoped, tag = 'scoped memory for tpu_custom_call.1']
    #allocation5 [shape = 'u8[8192]{0}', space=vmem, size = 0x2000, scoped, tag = 'output window, operand 0, single buffered']
    %6 = vsyncpa [#allocation3], 0
    %7 = vsyncpa [#allocation4], 0
    // Predicated region
    $region2: #{tpu_custom_call.1} parent=1 // pred_check
      _
    $region3: #{tpu_custom_call.1} parent=1 // pred_check_branch
      %9 = sbr.rel (0) target = $region5
    $region4: #{tpu_custom_call.1} parent=1 // pred_region
      %11 = vsyncadd [#allocation3], 0
      %s13 = sshll.u32 %s0, 4
      %s14 = int_to_ptr.hbm [resolvable:$true] %s13
      %s15 = sshll.u32 [#allocation2], 4
      %s16 = int_to_ptr.vmem [resolvable:$true] %s15
      %18 = dma.hbm_to_vmem [thread:$0]  %s14, 256, %s16, [#allocation3]
    $region5: #{tpu_custom_call.1} parent=1 // pred_fallthru
      _
    // Predicated region
    $region6: #{tpu_custom_call.1} parent=1 // pred_check
      _
    $region7: #{tpu_custom_call.1} parent=1 // pred_check_branch
      %20 = sbr.rel (0) target = $region9
    $region8: #{tpu_custom_call.1} parent=1 // pred_region
      %22 = dma.done [#allocation3], 256
    $region9: #{tpu_custom_call.1} parent=1 // pred_fallthru
      _
    %v23 = vld [vmem:[#allocation2] sm:$0xff]
    %v24 = vld [vmem:[#allocation2 + $0x8] sm:$0xff]
    %25 = vrot.lane.b32.xlu0 %v23, 1
    %v26 = vpop.permute.xlu0 %25
    %27 = vrot.lane.b32.xlu0 %v24, 1
    %v28 = vpop.permute.xlu0 %27
    %v29 = vlaneseq
    %v30 = vand.u32 %v29, 127
    %vm31 = vcmp.lt.s32.totalorder %v30, 1
    %v32 = vsel %vm31, %v26, %v28
    %v33 = vsel %vm31, %v28, %v26
    %34 = vst [vmem:[#allocation5] sm:$0xff] %v33
    %35 = vst [vmem:[#allocation5 + $0x8] sm:$0xff] %v32
    // Predicated region
    $region10: #{tpu_custom_call.1} parent=1 // pred_check
      _
    $region11: #{tpu_custom_call.1} parent=1 // pred_check_branch
      %37 = sbr.rel (0) target = $region13
    $region12: #{tpu_custom_call.1} parent=1 // pred_region
      %39 = vsyncadd [#allocation4], 0
      %s41 = sshll.u32 [#allocation5], 4
      %s42 = int_to_ptr.vmem [resolvable:$true] %s41
      %s43 = sshll.u32 %s1, 4
      %s44 = int_to_ptr.hbm [resolvable:$true] %s43
      %46 = dma.vmem_to_hbm [thread:$0]  %s42, 256, %s44, [#allocation4]
    $region13: #{tpu_custom_call.1} parent=1 // pred_fallthru
      _
    // Predicated region
    $region14: #{tpu_custom_call.1} parent=1 // pred_check
      _
    $region15: #{tpu_custom_call.1} parent=1 // pred_check_branch
      %48 = sbr.rel (0) target = $region17
    $region16: #{tpu_custom_call.1} parent=1 // pred_region
      %50 = dma.done [#allocation4], 256
    $region17: #{tpu_custom_call.1} parent=1 // pred_fallthru
      _
    %51 = vsyncpa [#allocation3], 1
    %52 = vsyncpa [#allocation4], 1

</llo_original>
